<compile_context>
chip_gen: v7x
topology: tpu7x:2x2x1
jax: 0.10.0
libtpu: 0.0.40
codegen_flags: <defaults>
</compile_context>

<pallas_src>
import functools
import math

import jax
import jax.numpy as jnp
from jax import lax
from jax.experimental import pallas as pl
from jax.experimental.pallas import tpu as pltpu

_LN_EPS = 1e-12                      # HF BertConfig default layer_norm_eps
_VMEM_LIMIT = 64 * 1024 * 1024       # <= v7x physical VMEM; > v5e/v6e defaults


def _cparams():
    return pltpu.CompilerParams(
        dimension_semantics=("parallel",),
        vmem_limit_bytes=_VMEM_LIMIT,
    )


def _gelu(x):
    # exact erf-GELU (HF BertConfig default hidden_act="gelu")
    return 0.5 * x * (1.0 + lax.erf(x / jnp.float32(math.sqrt(2.0))))


def _layernorm(x, gamma, beta, eps):
    mu = jnp.mean(x, axis=-1, keepdims=True)
    var = jnp.mean(jnp.square(x - mu), axis=-1, keepdims=True)
    return (x - mu) * lax.rsqrt(var + eps) * gamma + beta


# --------------------- embedding: comb_proj + pos/tok + LN -------------------

def _embed_kernel(e_ref, w_ref, b_ref, pt_ref, g_ref, bt_ref, o_ref, *, eps):
    e = e_ref[...].astype(jnp.bfloat16)                       # (S, 4E)
    x = jnp.dot(e, w_ref[...], preferred_element_type=jnp.float32)
    x = x + b_ref[...].astype(jnp.float32)
    x = x + pt_ref[...].astype(jnp.float32)                   # pos + token_type(0)
    o_ref[...] = _layernorm(x, g_ref[...], bt_ref[...], eps).astype(o_ref.dtype)


def embed_combine(embed, comb_w, comb_b, postok, ln_g, ln_b):
    B, S, E4 = embed.shape
    H = comb_w.shape[1]
    return pl.pallas_call(
        functools.partial(_embed_kernel, eps=_LN_EPS),
        out_shape=jax.ShapeDtypeStruct((B, S, H), jnp.float32),
        grid=(B,),
        in_specs=[
            pl.BlockSpec((None, S, E4), lambda b: (b, 0, 0)),
            pl.BlockSpec((E4, H), lambda b: (0, 0)),
            pl.BlockSpec((1, H), lambda b: (0, 0)),
            pl.BlockSpec((S, H), lambda b: (0, 0)),
            pl.BlockSpec((1, H), lambda b: (0, 0)),
            pl.BlockSpec((1, H), lambda b: (0, 0)),
        ],
        out_specs=pl.BlockSpec((None, S, H), lambda b: (b, 0, 0)),
        compiler_params=_cparams(),
    )(embed, comb_w, comb_b.reshape(1, H), postok,
      ln_g.reshape(1, H), ln_b.reshape(1, H))


# ----------------- fused QKV + attention + out-proj + residual LN ------------

def _attn_block_kernel(x_ref, m_ref, wqkv_ref, bqkv_ref, wo_ref, bo_ref,
                       g_ref, b_ref, o_ref, *, n_heads, eps):
    x = x_ref[...].astype(jnp.float32)                        # (S, H)
    S, H = x.shape
    dh = H // n_heads
    scale = 1.0 / math.sqrt(dh)

    qkv = jnp.dot(x.astype(jnp.bfloat16), wqkv_ref[...],
                  preferred_element_type=jnp.float32)
    qkv = qkv + bqkv_ref[...].astype(jnp.float32)             # (S, 3H)
    q = qkv[:, :H]
    k = qkv[:, H:2 * H]
    v = qkv[:, 2 * H:]
    mask = m_ref[...].astype(jnp.float32)                     # (1, S), 0 / -1e4

    # Accumulate ctx @ Wo head-by-head (equivalent to concat(ctx_h) @ Wo),
    # avoiding any in-kernel reshape/transpose of the lane dimension.
    attn = jnp.zeros((S, H), jnp.float32)
    for h in range(n_heads):
        sl = slice(h * dh, (h + 1) * dh)
        qh = q[:, sl].astype(jnp.bfloat16)
        kh = k[:, sl].astype(jnp.bfloat16)
        vh = v[:, sl].astype(jnp.bfloat16)
        s = lax.dot_general(qh, kh, (((1,), (1,)), ((), ())),
                            preferred_element_type=jnp.float32) * scale
        s = s + mask                                           # key mask, bcast rows
        s = s - jnp.max(s, axis=-1, keepdims=True)
        p = jnp.exp(s)
        p = p * pl.reciprocal(jnp.sum(p, axis=-1, keepdims=True), approx=True)
        ctx_h = jnp.dot(p.astype(jnp.bfloat16), vh,
                        preferred_element_type=jnp.float32)    # (S, dh)
        attn = attn + jnp.dot(ctx_h.astype(jnp.bfloat16), wo_ref[sl, :],
                              preferred_element_type=jnp.float32)
    attn = attn + bo_ref[...].astype(jnp.float32)

    o_ref[...] = _layernorm(attn + x, g_ref[...], b_ref[...], eps).astype(o_ref.dtype)


def attention_block(h, add_mask, layer, n_heads):
    B, S, H = h.shape
    return pl.pallas_call(
        functools.partial(_attn_block_kernel, n_heads=n_heads, eps=_LN_EPS),
        out_shape=jax.ShapeDtypeStruct((B, S, H), jnp.float32),
        grid=(B,),
        in_specs=[
            pl.BlockSpec((None, S, H), lambda b: (b, 0, 0)),
            pl.BlockSpec((None, 1, S), lambda b: (b, 0, 0)),
            pl.BlockSpec((H, 3 * H), lambda b: (0, 0)),
            pl.BlockSpec((1, 3 * H), lambda b: (0, 0)),
            pl.BlockSpec((H, H), lambda b: (0, 0)),
            pl.BlockSpec((1, H), lambda b: (0, 0)),
            pl.BlockSpec((1, H), lambda b: (0, 0)),
            pl.BlockSpec((1, H), lambda b: (0, 0)),
        ],
        out_specs=pl.BlockSpec((None, S, H), lambda b: (b, 0, 0)),
        compiler_params=_cparams(),
    )(h, add_mask, layer["w_qkv"], layer["b_qkv"].reshape(1, -1),
      layer["wo"], layer["bo"].reshape(1, -1),
      layer["ln1_g"].reshape(1, -1), layer["ln1_b"].reshape(1, -1))


# ------------------------ fused FFN + residual LN ----------------------------

def _ffn_kernel(x_ref, wi_ref, bi_ref, wo_ref, bo_ref, g_ref, b_ref, o_ref, *, eps):
    x = x_ref[...].astype(jnp.float32)                         # (S, H)
    inter = jnp.dot(x.astype(jnp.bfloat16), wi_ref[...],
                    preferred_element_type=jnp.float32)
    inter = _gelu(inter + bi_ref[...].astype(jnp.float32))     # (S, I) stays in VMEM
    out = jnp.dot(inter.astype(jnp.bfloat16), wo_ref[...],
                  preferred_element_type=jnp.float32)
    out = out + bo_ref[...].astype(jnp.float32)
    o_ref[...] = _layernorm(out + x, g_ref[...], b_ref[...], eps).astype(o_ref.dtype)


def ffn_block(h, layer):
    B, S, H = h.shape
    I = layer["wi"].shape[1]
    return pl.pallas_call(
        functools.partial(_ffn_kernel, eps=_LN_EPS),
        out_shape=jax.ShapeDtypeStruct((B, S, H), jnp.float32),
        grid=(B,),
        in_specs=[
            pl.BlockSpec((None, S, H), lambda b: (b, 0, 0)),
            pl.BlockSpec((H, I), lambda b: (0, 0)),
            pl.BlockSpec((1, I), lambda b: (0, 0)),
            pl.BlockSpec((I, H), lambda b: (0, 0)),
            pl.BlockSpec((1, H), lambda b: (0, 0)),
            pl.BlockSpec((1, H), lambda b: (0, 0)),
            pl.BlockSpec((1, H), lambda b: (0, 0)),
        ],
        out_specs=pl.BlockSpec((None, S, H), lambda b: (b, 0, 0)),
        compiler_params=_cparams(),
    )(h, layer["wi"], layer["bi"].reshape(1, -1),
      layer["wo2"], layer["bo2"].reshape(1, -1),
      layer["ln2_g"].reshape(1, -1), layer["ln2_b"].reshape(1, -1))


# ------------------------------ final fc head --------------------------------

def _fc_kernel(x_ref, w_ref, b_ref, o_ref, *, sigmoid):
    y = jnp.dot(x_ref[...].astype(jnp.float32), w_ref[...],
                preferred_element_type=jnp.float32) + b_ref[...]
    if sigmoid:
        y = jax.nn.sigmoid(y)
    o_ref[...] = y.astype(o_ref.dtype)


def fc_head(h, fc_w, fc_b, isinfer):
    B, S, H = h.shape
    return pl.pallas_call(
        functools.partial(_fc_kernel, sigmoid=bool(isinfer)),
        out_shape=jax.ShapeDtypeStruct((B, S, 1), jnp.float32),
        grid=(B,),
        in_specs=[
            pl.BlockSpec((None, S, H), lambda b: (b, 0, 0)),
            pl.BlockSpec((H, 1), lambda b: (0, 0)),
            pl.BlockSpec((1, 1), lambda b: (0, 0)),
        ],
        out_specs=pl.BlockSpec((None, S, 1), lambda b: (b, 0, 0)),
        compiler_params=_cparams(),
    )(h, fc_w, fc_b.reshape(1, 1))


# ------------------------------- parameters ----------------------------------

def init_params(key, cfg):
    H = cfg["hidden_dim"]
    E = H // 3
    I = cfg["intermediate_size"]

    def nrm(k, shape, dtype=jnp.float32, scale=0.02):
        return (scale * jax.random.normal(k, shape, dtype=jnp.float32)).astype(dtype)

    keys = iter(jax.random.split(key, 16 + 8 * cfg["n_layers"]))
    p = {
        "emb_interaction": nrm(next(keys), (3, E)),
        "emb_test": nrm(next(keys), (cfg["n_test"] + 1, E)),
        "emb_question": nrm(next(keys), (cfg["n_questions"] + 1, E)),
        "emb_tag": nrm(next(keys), (cfg["n_tag"] + 1, E)),
        "comb_w": nrm(next(keys), (4 * E, H), jnp.bfloat16),
        "comb_b": jnp.zeros((H,), jnp.float32),
        "pos_emb": nrm(next(keys), (cfg["max_seq_len"], H)),
        "tok_emb": nrm(next(keys), (2, H)),
        "emb_ln_g": jnp.ones((H,), jnp.float32),
        "emb_ln_b": jnp.zeros((H,), jnp.float32),
        "fc_w": nrm(next(keys), (H, 1)),
        "fc_b": jnp.zeros((1,), jnp.float32),
        "layers": [],
    }
    for _ in range(cfg["n_layers"]):
        p["layers"].append({
            "w_qkv": nrm(next(keys), (H, 3 * H), jnp.bfloat16),   # Wq | Wk | Wv
            "b_qkv": jnp.zeros((3 * H,), jnp.float32),
            "wo": nrm(next(keys), (H, H), jnp.bfloat16),
            "bo": jnp.zeros((H,), jnp.float32),
            "ln1_g": jnp.ones((H,), jnp.float32),
            "ln1_b": jnp.zeros((H,), jnp.float32),
            "wi": nrm(next(keys), (H, I), jnp.bfloat16),
            "bi": jnp.zeros((I,), jnp.float32),
            "wo2": nrm(next(keys), (I, H), jnp.bfloat16),
            "bo2": jnp.zeros((H,), jnp.float32),
            "ln2_g": jnp.ones((H,), jnp.float32),
            "ln2_b": jnp.zeros((H,), jnp.float32),
        })
    return p


# --------------------------------- forward -----------------------------------

def bert_forward(params, inputs, cfg):
    test, question, tag, _correct, mask, interaction = inputs
    B, S = interaction.shape
    nH = cfg["n_heads"]

    # Embedding lookups + concat (gather is glue; kept in plain JAX).
    embed = jnp.concatenate(
        [params["emb_interaction"][interaction],
         params["emb_test"][test],
         params["emb_question"][question],
         params["emb_tag"][tag]], axis=2)                      # (B, S, 4*(H//3))

    # position + token_type(0) rows: small (S, H); the (B,S,H) broadcast is
    # done inside the embedding kernel, never materialized in HBM.
    postok = params["pos_emb"][:S] + params["tok_emb"][0]

    h = embed_combine(embed, params["comb_w"], params["comb_b"], postok,
                      params["emb_ln_g"], params["emb_ln_b"])  # (B, S, H)

    # Extended attention mask: (1 - mask) * -10000, broadcast over query rows.
    add_mask = ((1.0 - mask.astype(jnp.float32)) * -10000.0).reshape(B, 1, S)

    for layer in params["layers"]:
        h = attention_block(h, add_mask, layer, nH)
        h = ffn_block(h, layer)

    out = fc_head(h, params["fc_w"], params["fc_b"], cfg["isinfer"])  # (B, S, 1)
    return out.reshape(B, S)


# ----------------------------------- main -------------------------------------

if __name__ == "__main__":
    cfg = dict(hidden_dim=32, n_layers=2, n_heads=4,
               n_test=10, n_questions=20, n_tag=5,
               max_seq_len=8, intermediate_size=3072, isinfer=True)

    root = jax.random.PRNGKey(0)
    kp, kt, kq, kg, ki = jax.random.split(root, 5)
    params = init_params(kp, cfg)

    B, S = 2, cfg["max_seq_len"]
    test = jax.random.randint(kt, (B, S), 0, cfg["n_test"] + 1, dtype=jnp.int32)
    question = jax.random.randint(kq, (B, S), 0, cfg["n_questions"] + 1, dtype=jnp.int32)
    tag = jax.random.randint(kg, (B, S), 0, cfg["n_tag"] + 1, dtype=jnp.int32)
    interaction = jax.random.randint(ki, (B, S), 0, 3, dtype=jnp.int32)
    correct = jnp.zeros((B, S), jnp.int32)                     # unused ("_") slot
    mask = jnp.array([[1] * S, [1] * (S - 3) + [0] * 3], dtype=jnp.float32)

    out = bert_forward(params, (test, question, tag, correct, mask, interaction), cfg)
    jax.block_until_ready(out)
    assert out.shape == (B, S) and out.dtype == jnp.float32
    assert bool(jnp.all(jnp.isfinite(out)))
    print("KERNEL_OK")
</pallas_src>

<mosaic_0001>
module attributes {stable_mosaic.version = 11 : i64} {
  func.func @_embed_kernel(%arg0: i32, %arg1: memref<1x8x40xf32, #tpu.memory_space<vmem>>, %arg2: memref<40x32xbf16, #tpu.memory_space<vmem>>, %arg3: memref<1x32xf32, #tpu.memory_space<vmem>>, %arg4: memref<8x32xf32, #tpu.memory_space<vmem>>, %arg5: memref<1x32xf32, #tpu.memory_space<vmem>>, %arg6: memref<1x32xf32, #tpu.memory_space<vmem>>, %arg7: memref<1x8x32xf32, #tpu.memory_space<vmem>>) attributes {dimension_semantics = [#tpu.dimension_semantics<parallel>], iteration_bounds = array<i64: 2>, scalar_prefetch = 0 : i64, scratch_operands = 0 : i64, tpu.core_type = #tpu.core_type<tc>, window_params = [{transform_indices = @transform_0, window_bounds = array<i64: 1, 8, 40>}, {pipeline_mode = #tpu.pipeline_mode<synchronous>, transform_indices = @transform_1, window_bounds = array<i64: 40, 32>}, {pipeline_mode = #tpu.pipeline_mode<synchronous>, transform_indices = @transform_2, window_bounds = array<i64: 1, 32>}, {pipeline_mode = #tpu.pipeline_mode<synchronous>, transform_indices = @transform_3, window_bounds = array<i64: 8, 32>}, {pipeline_mode = #tpu.pipeline_mode<synchronous>, transform_indices = @transform_4, window_bounds = array<i64: 1, 32>}, {pipeline_mode = #tpu.pipeline_mode<synchronous>, transform_indices = @transform_5, window_bounds = array<i64: 1, 32>}, {transform_indices = @transform_6, window_bounds = array<i64: 1, 8, 32>}]} {
    %c0 = arith.constant 0 : index
    %c0_0 = arith.constant 0 : index
    %c0_1 = arith.constant 0 : index
    %0 = vector.load %arg1[%c0, %c0_0, %c0_1] : memref<1x8x40xf32, #tpu.memory_space<vmem>>, vector<1x8x40xf32>
    %1 = vector.shape_cast %0 : vector<1x8x40xf32> to vector<8x40xf32>
    %2 = arith.truncf %1 : vector<8x40xf32> to vector<8x40xbf16>
    %c0_2 = arith.constant 0 : index
    %c0_3 = arith.constant 0 : index
    %3 = vector.load %arg2[%c0_2, %c0_3] : memref<40x32xbf16, #tpu.memory_space<vmem>>, vector<40x32xbf16>
    %cst = arith.constant dense<0.000000e+00> : vector<8x32xf32>
    %4 = tpu.matmul %2, %3, %cst {dimension_numbers = #tpu.dot_dimension_numbers<[1], [0], [0], [1], [0, 0, 1, 1], [], []>} : vector<8x40xbf16>, vector<40x32xbf16>, vector<8x32xf32> -> vector<8x32xf32>
    %c0_4 = arith.constant 0 : index
    %c0_5 = arith.constant 0 : index
    %5 = vector.load %arg3[%c0_4, %c0_5] : memref<1x32xf32, #tpu.memory_space<vmem>>, vector<1x32xf32>
    %6 = vector.broadcast %5 : vector<1x32xf32> to vector<8x32xf32>
    %7 = arith.addf %4, %6 : vector<8x32xf32>
    %c0_6 = arith.constant 0 : index
    %c0_7 = arith.constant 0 : index
    %8 = vector.load %arg4[%c0_6, %c0_7] : memref<8x32xf32, #tpu.memory_space<vmem>>, vector<8x32xf32>
    %9 = arith.addf %7, %8 : vector<8x32xf32>
    %c0_8 = arith.constant 0 : index
    %c0_9 = arith.constant 0 : index
    %10 = vector.load %arg5[%c0_8, %c0_9] : memref<1x32xf32, #tpu.memory_space<vmem>>, vector<1x32xf32>
    %c0_10 = arith.constant 0 : index
    %c0_11 = arith.constant 0 : index
    %11 = vector.load %arg6[%c0_10, %c0_11] : memref<1x32xf32, #tpu.memory_space<vmem>>, vector<1x32xf32>
    %cst_12 = arith.constant dense<0.000000e+00> : vector<8xf32>
    %12 = vector.multi_reduction <add>, %9, %cst_12 [1] : vector<8x32xf32> to vector<8xf32>
    %13 = vector.shape_cast %12 : vector<8xf32> to vector<8x1xf32>
    %cst_13 = arith.constant 3.200000e+01 : f32
    %14 = vector.broadcast %cst_13 : f32 to vector<8x1xf32>
    %15 = arith.divf %13, %14 : vector<8x1xf32>
    %16 = vector.broadcast %15 : vector<8x1xf32> to vector<8x32xf32>
    %17 = arith.subf %9, %16 : vector<8x32xf32>
    %18 = arith.mulf %17, %17 : vector<8x32xf32>
    %cst_14 = arith.constant dense<0.000000e+00> : vector<8xf32>
    %19 = vector.multi_reduction <add>, %18, %cst_14 [1] : vector<8x32xf32> to vector<8xf32>
    %20 = vector.shape_cast %19 : vector<8xf32> to vector<8x1xf32>
    %cst_15 = arith.constant 3.200000e+01 : f32
    %21 = vector.broadcast %cst_15 : f32 to vector<8x1xf32>
    %22 = arith.divf %20, %21 : vector<8x1xf32>
    %23 = vector.broadcast %15 : vector<8x1xf32> to vector<8x32xf32>
    %24 = arith.subf %9, %23 : vector<8x32xf32>
    %cst_16 = arith.constant 9.99999996E-13 : f32
    %25 = vector.broadcast %cst_16 : f32 to vector<8x1xf32>
    %26 = arith.addf %22, %25 : vector<8x1xf32>
    %27 = math.rsqrt %26 : vector<8x1xf32>
    %28 = vector.broadcast %27 : vector<8x1xf32> to vector<8x32xf32>
    %29 = arith.mulf %24, %28 : vector<8x32xf32>
    %30 = vector.broadcast %10 : vector<1x32xf32> to vector<8x32xf32>
    %31 = arith.mulf %29, %30 : vector<8x32xf32>
    %32 = vector.broadcast %11 : vector<1x32xf32> to vector<8x32xf32>
    %33 = arith.addf %31, %32 : vector<8x32xf32>
    %c0_17 = arith.constant 0 : index
    %c0_18 = arith.constant 0 : index
    %c0_19 = arith.constant 0 : index
    %34 = vector.load %arg7[%c0_17, %c0_18, %c0_19] : memref<1x8x32xf32, #tpu.memory_space<vmem>>, vector<1x8x32xf32>
    %35 = vector.shape_cast %34 : vector<1x8x32xf32> to vector<8x32xf32>
    %36 = vector.shape_cast %33 : vector<8x32xf32> to vector<1x8x32xf32>
    tpu.vector_store %arg7[%c0_17, %c0_18, %c0_19], %36 {strides = array<i32>} : memref<1x8x32xf32, #tpu.memory_space<vmem>>, vector<1x8x32xf32>,
    return
  }
  func.func @transform_0(%arg0: i32) -> (i32, i32, i32) {
    %c0_i32 = arith.constant 0 : i32
    %c0_i32_0 = arith.constant 0 : i32
    %c0_i32_1 = arith.constant 0 : i32
    return %arg0, %c0_i32, %c0_i32_0 : i32, i32, i32
  }
  func.func @transform_1(%arg0: i32) -> (i32, i32) {
    %c0_i32 = arith.constant 0 : i32
    %c0_i32_0 = arith.constant 0 : i32
    %c0_i32_1 = arith.constant 0 : i32
    return %c0_i32, %c0_i32_0 : i32, i32
  }
  func.func @transform_2(%arg0: i32) -> (i32, i32) {
    %c0_i32 = arith.constant 0 : i32
    %c0_i32_0 = arith.constant 0 : i32
    %c0_i32_1 = arith.constant 0 : i32
    return %c0_i32, %c0_i32_0 : i32, i32
  }
  func.func @transform_3(%arg0: i32) -> (i32, i32) {
    %c0_i32 = arith.constant 0 : i32
    %c0_i32_0 = arith.constant 0 : i32
    %c0_i32_1 = arith.constant 0 : i32
    return %c0_i32, %c0_i32_0 : i32, i32
  }
  func.func @transform_4(%arg0: i32) -> (i32, i32) {
    %c0_i32 = arith.constant 0 : i32
    %c0_i32_0 = arith.constant 0 : i32
    %c0_i32_1 = arith.constant 0 : i32
    return %c0_i32, %c0_i32_0 : i32, i32
  }
  func.func @transform_5(%arg0: i32) -> (i32, i32) {
    %c0_i32 = arith.constant 0 : i32
    %c0_i32_0 = arith.constant 0 : i32
    %c0_i32_1 = arith.constant 0 : i32
    return %c0_i32, %c0_i32_0 : i32, i32
  }
  func.func @transform_6(%arg0: i32) -> (i32, i32, i32) {
    %c0_i32 = arith.constant 0 : i32
    %c0_i32_0 = arith.constant 0 : i32
    %c0_i32_1 = arith.constant 0 : i32
    return %arg0, %c0_i32, %c0_i32_0 : i32, i32, i32
  }
}

</mosaic_0001>

<llo_original>
// kernel: tpu_custom_call.1
$region0: #{tpu_custom_call.1}
  #allocation0 [shape = 'u32[]', space=smem, size = 0x4, offset = 0x4, fixed_abs, tag = 'smem constant byte address 0x4 - core index']
  #allocation1 [shape = 'u32[144,128]{1,0:T(1,128)}', space=vmem, size = 0x12000, scoped, tag = 'internal scratch']
  %s0 = inlined_call_operand.hbm [shape: f32[2,8,40], index: 0, kind: input, shape index: {}]
  %s1 = inlined_call_operand.hbm [shape: bf16[40,32], index: 1, kind: input, shape index: {}]
  %s2 = inlined_call_operand.hbm [shape: f32[1,32], index: 2, kind: input, shape index: {}]
  %s3 = inlined_call_operand.hbm [shape: f32[8,32], index: 3, kind: input, shape index: {}]
  %s4 = inlined_call_operand.hbm [shape: f32[1,32], index: 4, kind: input, shape index: {}]
  %s5 = inlined_call_operand.hbm [shape: f32[1,32], index: 5, kind: input, shape index: {}]
  %s6 = inlined_call_operand.hbm [shape: f32[2,8,32], index: 6, kind: output, shape index: {}]
  %s7 = sld [smem:[#allocation0]]
  $region81: #{tpu_custom_call.1} parent=0
    _
  %s9 = ssub.s32 1, %s7
  %s10 = scalar_select 0, %s9, %s7
  $region1: #{tpu_custom_call.1} parent=0
    #allocation2 [shape = 'u8[8192]{0}', space=vmem, size = 0x2000, scoped, tag = 'input window, operand 0']
    #allocation3 [shape = 's32[2]{0}', space=sflag, size = 0x8, scoped, tag = 'scoped memory for tpu_custom_call.1']
    #allocation4 [shape = 's32[2]{0}', space=sflag, size = 0x8, scoped, tag = 'scoped memory for tpu_custom_call.1']
    #allocation5 [shape = 'u8[10240]{0}', space=vmem, size = 0x2800, scoped, tag = 'input window, operand 1, single buffered']
    #allocation6 [shape = 's32[1]{0}', space=sflag, size = 0x4, scoped, tag = 'scoped memory for tpu_custom_call.1']
    #allocation7 [shape = 'u8[512]{0}', space=vmem, size = 0x400, scoped, tag = 'input window, operand 2, single buffered']
    #allocation8 [shape = 'u8[4096]{0}', space=vmem, size = 0x1000, scoped, tag = 'input window, operand 3, single buffered']
    #allocation9 [shape = 's32[1]{0}', space=sflag, size = 0x4, scoped, tag = 'scoped memory for tpu_custom_call.1']
    #allocation10 [shape = 'u8[512]{0}', space=vmem, size = 0x400, scoped, tag = 'input window, operand 4, single buffered']
    #allocation11 [shape = 'u8[512]{0}', space=vmem, size = 0x400, scoped, tag = 'input window, operand 5, single buffered']
    #allocation12 [shape = 's32[1]{0}', space=sflag, size = 0x4, scoped, tag = 'scoped memory for tpu_custom_call.1']
    #allocation13 [shape = 'u8[8192]{0}', space=vmem, size = 0x2000, scoped, tag = 'output window, operand 0']
    %11 = vsyncpa [#allocation3], 0
    %s12 = scalar_lea.sflag [#allocation3], 1
    %13 = vsyncpa %s12, 0
    %14 = vsyncpa [#allocation6], 0
    %15 = vsyncpa [#allocation9], 0
    %16 = vsyncpa [#allocation12], 0
    %17 = vsyncpa [#allocation4], 0
    %s18 = scalar_lea.sflag [#allocation4], 1
    %19 = vsyncpa %s18, 0
    loop: start=0, step=1, limit=4
    $region2: #{tpu_custom_call.1} parent=1 // loop_pre_header
      _
    $region3: #{tpu_custom_call.1} parent=1 // loop_header
      %s21 = sphi 0, %s25
      %p22 = scmp.ge.s32.totalorder %s21, 4
      %s31 = sphi 0, %s33
      %s34 = sphi 0, %s31
      %s35 = sphi 0, %s34
      %s51 = sphi 0, %s35
      %s55 = sphi 0, %s55
      %s57 = sphi 0, %s55
      %s58 = sphi 0, %s57
      %s72 = sphi 0, %s58
      %s76 = sphi 0, %s76
      %s78 = sphi 0, %s76
      %s79 = sphi 0, %s78
      %s93 = sphi 0, %s79
      %s97 = sphi 0, %s97
      %s99 = sphi 0, %s97
      %s100 = sphi 0, %s99
      %s114 = sphi 0, %s100
      %s118 = sphi 0, %s118
      %s120 = sphi 0, %s118
      %s121 = sphi 0, %s120
      %s135 = sphi 0, %s121
      %s139 = sphi 0, %s139
      %s141 = sphi 0, %s139
      %s142 = sphi 0, %s141
      %s156 = sphi 0, %s142
      %s162 = sphi 0, %s164
      %s165 = sphi 0, %s162
      %s166 = sphi 0, %s165
      %s182 = sphi 0, %s166
    $region4: #{tpu_custom_call.1} parent=1 // loop_header_branch
      %24 = sbr.rel (%p22) target = $region8
    $region5: #{tpu_custom_call.1} parent=1 // loop_body
      %s26 = ssub.s32 %s21, 1
      %s27 = ssub.s32 %s21, 2
      %s28 = sadd.s32 %s21, 1
      %s29 = ssub.s32 %s21, %s28
      %p30 = scmp.eq.s32.totalorder %s29, 0
      %s32 = sadd.s32 %s31, 1
      %s33 = scalar_select %p30, %s31, %s32
      %p36 = pneg %p30
      %p37 = scmp.eq.s32.totalorder %s21, 1
      %p38 = por %p36, %p37
      %p39 = scmp.ne.s32.totalorder %s31, %s34
      %p40 = scmp.eq.s32.totalorder %s21, 0
      %p41 = por %p39, %p40
      %p42 = scmp.ne.s32.totalorder %s31, %s34
      %p43 = scmp.eq.s32.totalorder %s26, 1
      %p44 = por %p42, %p43
      %p45 = scmp.ne.s32.totalorder %s34, %s35
      %p46 = scmp.eq.s32.totalorder %s26, 0
      %p47 = por %p45, %p46
      %p48 = scmp.ne.s32.totalorder %s34, %s35
      %p49 = scmp.eq.s32.totalorder %s27, 1
      %p50 = por %p48, %p49
      %p52 = scmp.ne.s32.totalorder %s35, %s51
      %p53 = scmp.eq.s32.totalorder %s27, 0
      %p54 = por %p52, %p53
      %s56 = sadd.s32 %s55, 1
      %p59 = scmp.eq.s32.totalorder %s21, 1
      %p60 = scmp.ne.s32.totalorder %s55, %s57
      %p61 = scmp.eq.s32.totalorder %s21, 0
      %p62 = por %p60, %p61
      %p63 = scmp.ne.s32.totalorder %s55, %s57
      %p64 = scmp.eq.s32.totalorder %s26, 1
      %p65 = por %p63, %p64
      %p66 = scmp.ne.s32.totalorder %s57, %s58
      %p67 = scmp.eq.s32.totalorder %s26, 0
      %p68 = por %p66, %p67
      %p69 = scmp.ne.s32.totalorder %s57, %s58
      %p70 = scmp.eq.s32.totalorder %s27, 1
      %p71 = por %p69, %p70
      %p73 = scmp.ne.s32.totalorder %s58, %s72
      %p74 = scmp.eq.s32.totalorder %s27, 0
      %p75 = por %p73, %p74
      %s77 = sadd.s32 %s76, 1
      %p80 = scmp.eq.s32.totalorder %s21, 1
      %p81 = scmp.ne.s32.totalorder %s76, %s78
      %p82 = scmp.eq.s32.totalorder %s21, 0
      %p83 = por %p81, %p82
      %p84 = scmp.ne.s32.totalorder %s76, %s78
      %p85 = scmp.eq.s32.totalorder %s26, 1
      %p86 = por %p84, %p85
      %p87 = scmp.ne.s32.totalorder %s78, %s79
      %p88 = scmp.eq.s32.totalorder %s26, 0
      %p89 = por %p87, %p88
      %p90 = scmp.ne.s32.totalorder %s78, %s79
      %p91 = scmp.eq.s32.totalorder %s27, 1
      %p92 = por %p90, %p91
      %p94 = scmp.ne.s32.totalorder %s79, %s93
      %p95 = scmp.eq.s32.totalorder %s27, 0
      %p96 = por %p94, %p95
      %s98 = sadd.s32 %s97, 1
      %p101 = scmp.eq.s32.totalorder %s21, 1
      %p102 = scmp.ne.s32.totalorder %s97, %s99
      %p103 = scmp.eq.s32.totalorder %s21, 0
      %p104 = por %p102, %p103
      %p105 = scmp.ne.s32.totalorder %s97, %s99
      %p106 = scmp.eq.s32.totalorder %s26, 1
      %p107 = por %p105, %p106
      %p108 = scmp.ne.s32.totalorder %s99, %s100
      %p109 = scmp.eq.s32.totalorder %s26, 0
      %p110 = por %p108, %p109
      %p111 = scmp.ne.s32.totalorder %s99, %s100
      %p112 = scmp.eq.s32.totalorder %s27, 1
      %p113 = por %p111, %p112
      %p115 = scmp.ne.s32.totalorder %s100, %s114
      %p116 = scmp.eq.s32.totalorder %s27, 0
      %p117 = por %p115, %p116
      %s119 = sadd.s32 %s118, 1
      %p122 = scmp.eq.s32.totalorder %s21, 1
      %p123 = scmp.ne.s32.totalorder %s118, %s120
      %p124 = scmp.eq.s32.totalorder %s21, 0
      %p125 = por %p123, %p124
      %p126 = scmp.ne.s32.totalorder %s118, %s120
      %p127 = scmp.eq.s32.totalorder %s26, 1
      %p128 = por %p126, %p127
      %p129 = scmp.ne.s32.totalorder %s120, %s121
      %p130 = scmp.eq.s32.totalorder %s26, 0
      %p131 = por %p129, %p130
      %p132 = scmp.ne.s32.totalorder %s120, %s121
      %p133 = scmp.eq.s32.totalorder %s27, 1
      %p134 = por %p132, %p133
      %p136 = scmp.ne.s32.totalorder %s121, %s135
      %p137 = scmp.eq.s32.totalorder %s27, 0
      %p138 = por %p136, %p137
      %s140 = sadd.s32 %s139, 1
      %p143 = scmp.eq.s32.totalorder %s21, 1
      %p144 = scmp.ne.s32.totalorder %s139, %s141
      %p145 = scmp.eq.s32.totalorder %s21, 0
      %p146 = por %p144, %p145
      %p147 = scmp.ne.s32.totalorder %s139, %s141
      %p148 = scmp.eq.s32.totalorder %s26, 1
      %p149 = por %p147, %p148
      %p150 = scmp.ne.s32.totalorder %s141, %s142
      %p151 = scmp.eq.s32.totalorder %s26, 0
      %p152 = por %p150, %p151
      %p153 = scmp.ne.s32.totalorder %s141, %s142
      %p154 = scmp.eq.s32.totalorder %s27, 1
      %p155 = por %p153, %p154
      %p157 = scmp.ne.s32.totalorder %s142, %s156
      %p158 = scmp.eq.s32.totalorder %s27, 0
      %p159 = por %p157, %p158
      %s160 = ssub.s32 %s21, %s28
      %p161 = scmp.eq.s32.totalorder %s160, 0
      %s163 = sadd.s32 %s162, 1
      %s164 = scalar_select %p161, %s162, %s163
      %p167 = pneg %p161
      %p168 = scmp.eq.s32.totalorder %s21, 1
      %p169 = por %p167, %p168
      %p170 = scmp.ne.s32.totalorder %s162, %s165
      %p171 = scmp.eq.s32.totalorder %s21, 0
      %p172 = por %p170, %p171
      %p173 = scmp.ne.s32.totalorder %s162, %s165
      %p174 = scmp.eq.s32.totalorder %s26, 1
      %p175 = por %p173, %p174
      %p176 = scmp.ne.s32.totalorder %s165, %s166
      %p177 = scmp.eq.s32.totalorder %s26, 0
      %p178 = por %p176, %p177
      %p179 = scmp.ne.s32.totalorder %s165, %s166
      %p180 = scmp.eq.s32.totalorder %s27, 1
      %p181 = por %p179, %p180
      %p183 = scmp.ne.s32.totalorder %s166, %s182
      %p184 = scmp.eq.s32.totalorder %s27, 0
      %p185 = por %p183, %p184
      %p186 = scmp.le.s32.totalorder 1, %s21
      %p187 = scmp.lt.s32.totalorder %s21, 3
      %p188 = pnand %p186, %p187
      %p189 = pneg %p188
      // Predicated region
      $region9: #{tpu_custom_call.1} parent=5 // pred_check
        _
      $region10: #{tpu_custom_call.1} parent=5 // pred_check_branch
        %191 = sbr.rel (%p188) target = $region12
      $region11: #{tpu_custom_call.1} parent=5 // pred_region
        %s192 = ssub.s32 %s21, 1
        // Predicated region
        $region13: #{tpu_custom_call.1} parent=11 // pred_check
          %p193 = pneg %p68
        $region14: #{tpu_custom_call.1} parent=11 // pred_check_branch
          %195 = sbr.rel (%p193) target = $region16
        $region15: #{tpu_custom_call.1} parent=11 // pred_region
          %s197 = ssub.s32 320, 320
          %198 = vsyncadd [#allocation6], %s197
          %s199 = sshll.u32 [#allocation5], 4
          %s200 = int_to_ptr.vmem [resolvable:$true] %s199
          %205 = dma.hbm_to_vmem [thread:$0]  %s1, 320, %s200, [#allocation6], 64, 64, 4
        $region16: #{tpu_custom_call.1} parent=11 // pred_fallthru
          _
        // Predicated region
        $region17: #{tpu_custom_call.1} parent=11 // pred_check
          %p206 = pneg %p89
        $region18: #{tpu_custom_call.1} parent=11 // pred_check_branch
          %208 = sbr.rel (%p206) target = $region20
        $region19: #{tpu_custom_call.1} parent=11 // pred_region
          %s210 = ssub.s32 16, 16
          %211 = vsyncadd [#allocation6], %s210
          %s213 = sshll.u32 [#allocation7], 4
          %s214 = int_to_ptr.vmem [resolvable:$true] %s213
          %216 = dma.hbm_to_vmem [thread:$0]  %s2, 16, %s214, [#allocation6]
        $region20: #{tpu_custom_call.1} parent=11 // pred_fallthru
          _
        // Predicated region
        $region21: #{tpu_custom_call.1} parent=11 // pred_check
          %p217 = pneg %p110
        $region22: #{tpu_custom_call.1} parent=11 // pred_check_branch
          %219 = sbr.rel (%p217) target = $region24
        $region23: #{tpu_custom_call.1} parent=11 // pred_region
          %s221 = ssub.s32 128, 128
          %222 = vsyncadd [#allocation9], %s221
          %s224 = sshll.u32 [#allocation8], 4
          %s225 = int_to_ptr.vmem [resolvable:$true] %s224
          %227 = dma.hbm_to_vmem [thread:$0]  %s3, 128, %s225, [#allocation9]
        $region24: #{tpu_custom_call.1} parent=11 // pred_fallthru
          _
        // Predicated region
        $region25: #{tpu_custom_call.1} parent=11 // pred_check
          %p228 = pneg %p131
        $region26: #{tpu_custom_call.1} parent=11 // pred_check_branch
          %230 = sbr.rel (%p228) target = $region28
        $region27: #{tpu_custom_call.1} parent=11 // pred_region
          %s232 = ssub.s32 16, 16
          %233 = vsyncadd [#allocation9], %s232
          %s235 = sshll.u32 [#allocation10], 4
          %s236 = int_to_ptr.vmem [resolvable:$true] %s235
          %238 = dma.hbm_to_vmem [thread:$0]  %s4, 16, %s236, [#allocation9]
        $region28: #{tpu_custom_call.1} parent=11 // pred_fallthru
          _
        // Predicated region
        $region29: #{tpu_custom_call.1} parent=11 // pred_check
          %p239 = pneg %p152
        $region30: #{tpu_custom_call.1} parent=11 // pred_check_branch
          %241 = sbr.rel (%p239) target = $region32
        $region31: #{tpu_custom_call.1} parent=11 // pred_region
          %s243 = ssub.s32 16, 16
          %244 = vsyncadd [#allocation12], %s243
          %s246 = sshll.u32 [#allocation11], 4
          %s247 = int_to_ptr.vmem [resolvable:$true] %s246
          %249 = dma.hbm_to_vmem [thread:$0]  %s5, 16, %s247, [#allocation12]
        $region32: #{tpu_custom_call.1} parent=11 // pred_fallthru
          _
      $region12: #{tpu_custom_call.1} parent=5 // pred_fallthru
        _
      %p250 = scmp.lt.s32.totalorder %s21, 2
      // Predicated region
      $region33: #{tpu_custom_call.1} parent=5 // pred_check
        %p251 = pneg %p250
      $region34: #{tpu_custom_call.1} parent=5 // pred_check_branch
        %253 = sbr.rel (%p251) target = $region36
      $region35: #{tpu_custom_call.1} parent=5 // pred_region
        // Predicated region
        $region37: #{tpu_custom_call.1} parent=35 // pred_check
          %p254 = pneg %p41
        $region38: #{tpu_custom_call.1} parent=35 // pred_check_branch
          %256 = sbr.rel (%p254) target = $region40
        $region39: #{tpu_custom_call.1} parent=35 // pred_region
          %s257 = sand.u32 %s31, 1
          %s258 = scalar_lea.sflag [#allocation3], %s257
          %s259 = sand.u32 %s31, 1
          %s260 = smul.addr %s259, 8
          %s261 = scalar_lea.vmem [#allocation2], %s260
          %s263 = ssub.s32 128, 128
          %264 = vsyncadd %s258, %s263
          %s265 = smul.addr %s21, 128
          %s266 = scalar_lea.hbm %s0, %s265
          %s268 = sshll.u32 %s261, 4
          %s269 = int_to_ptr.vmem [resolvable:$true] %s268
          %271 = dma.hbm_to_vmem [thread:$0]  %s266, 128, %s269, %s258
        $region40: #{tpu_custom_call.1} parent=35 // pred_fallthru
          _
      $region36: #{tpu_custom_call.1} parent=5 // pred_fallthru
        _
      %p272 = scmp.le.s32.totalorder 1, %s21
      %p273 = scmp.lt.s32.totalorder %s21, 3
      %p274 = pnand %p272, %p273
      %p275 = pneg %p274
      // Predicated region
      $region41: #{tpu_custom_call.1} parent=5 // pred_check
        _
      $region42: #{tpu_custom_call.1} parent=5 // pred_check_branch
        %277 = sbr.rel (%p274) target = $region44
      $region43: #{tpu_custom_call.1} parent=5 // pred_region
        %s278 = ssub.s32 %s21, 1
        %s279 = sand.u32 %s34, 1
        %s280 = scalar_lea.sflag [#allocation3], %s279
        %s281 = sand.u32 %s34, 1
        %s282 = smul.addr %s281, 8
        %s283 = scalar_lea.vmem [#allocation2], %s282
        // Predicated region
        $region45: #{tpu_custom_call.1} parent=43 // pred_check
          %p284 = pneg %p47
        $region46: #{tpu_custom_call.1} parent=43 // pred_check_branch
          %286 = sbr.rel (%p284) target = $region48
        $region47: #{tpu_custom_call.1} parent=43 // pred_region
          %287 = dma.done %s280, 128
        $region48: #{tpu_custom_call.1} parent=43 // pred_fallthru
          _
        // Predicated region
        $region49: #{tpu_custom_call.1} parent=43 // pred_check
          %p288 = pneg %p68
        $region50: #{tpu_custom_call.1} parent=43 // pred_check_branch
          %290 = sbr.rel (%p288) target = $region52
        $region51: #{tpu_custom_call.1} parent=43 // pred_region
          %291 = dma.done [#allocation6], 320
        $region52: #{tpu_custom_call.1} parent=43 // pred_fallthru
          _
        // Predicated region
        $region53: #{tpu_custom_call.1} parent=43 // pred_check
          %p292 = pneg %p89
        $region54: #{tpu_custom_call.1} parent=43 // pred_check_branch
          %294 = sbr.rel (%p292) target = $region56
        $region55: #{tpu_custom_call.1} parent=43 // pred_region
          %295 = dma.done [#allocation6], 16
        $region56: #{tpu_custom_call.1} parent=43 // pred_fallthru
          _
        // Predicated region
        $region57: #{tpu_custom_call.1} parent=43 // pred_check
          %p296 = pneg %p110
        $region58: #{tpu_custom_call.1} parent=43 // pred_check_branch
          %298 = sbr.rel (%p296) target = $region60
        $region59: #{tpu_custom_call.1} parent=43 // pred_region
          %299 = dma.done [#allocation9], 128
        $region60: #{tpu_custom_call.1} parent=43 // pred_fallthru
          _
        // Predicated region
        $region61: #{tpu_custom_call.1} parent=43 // pred_check
          %p300 = pneg %p131
        $region62: #{tpu_custom_call.1} parent=43 // pred_check_branch
          %302 = sbr.rel (%p300) target = $region64
        $region63: #{tpu_custom_call.1} parent=43 // pred_region
          %303 = dma.done [#allocation9], 16
        $region64: #{tpu_custom_call.1} parent=43 // pred_fallthru
          _
        // Predicated region
        $region65: #{tpu_custom_call.1} parent=43 // pred_check
          %p304 = pneg %p152
        $region66: #{tpu_custom_call.1} parent=43 // pred_check_branch
          %306 = sbr.rel (%p304) target = $region68
        $region67: #{tpu_custom_call.1} parent=43 // pred_region
          %307 = dma.done [#allocation12], 16
        $region68: #{tpu_custom_call.1} parent=43 // pred_fallthru
          _
        %s308 = sand.u32 %s34, 1
        %s309 = scalar_lea.sflag [#allocation3], %s308
        %s310 = sand.u32 %s34, 1
        %s311 = smul.addr %s310, 8
        %s312 = scalar_lea.vmem [#allocation2], %s311
        %p313 = pneg %p47
        %p314 = pneg %p44
        %p315 = pneg %p68
        %p316 = pneg %p65
        %p317 = pneg %p89
        %p318 = pneg %p86
        %p319 = pneg %p110
        %p320 = pneg %p107
        %p321 = pneg %p131
        %p322 = pneg %p128
        %p323 = pneg %p152
        %p324 = pneg %p149
        %p325 = pneg %p178
        %p326 = pneg %p175
        %s327 = sand.u32 %s165, 1
        %s328 = scalar_lea.sflag [#allocation4], %s327
        %s329 = sand.u32 %s165, 1
        %s330 = smul.addr %s329, 8
        %s331 = scalar_lea.vmem [#allocation13], %s330
        %v333 = vld [vmem:[%s283] sm:$0xff]
        %v334 = vpack.c.bf16 %v333, %v333
        %v335 = vld [vmem:[#allocation5] sm:$0xf]
        %v336 = vld [vmem:[#allocation5 + $0x4] sm:$0xf]
        %v337 = vld [vmem:[#allocation5 + $0x8] sm:$0xf]
        %v338 = vld [vmem:[#allocation5 + $0xc] sm:$0xf]
        %v339 = vld [vmem:[#allocation5 + $0x10] sm:$0xf]
        %v340 = vld [vmem:[#allocation7] sm:$0x1]
        %v342 = vlaneseq
        %v343 = vshrl.u32 %v342, 7
        %v344 = vsub.s32 0, %v343
        %v345 = vrot.slane %v340, %v344
        %v352 = vunpack.c.l.b16 %v335
        %v353 = vunpack.c.l.b16 %v336
        %v354 = vunpack.c.l.b16 %v337
        %v355 = vunpack.c.l.b16 %v338
        %v356 = vunpack.c.l.b16 %v339
        %v357 = vpack.c.b16 %v353, %v352
        %v358 = vpack.c.b16 %v355, %v354
        %v359 = vpack.c.b16 %v356, %v356
        %vm362 = vcmask 326656
        %v364 = vsel %vm362, %v334, 0
        %vm366 = vcmask 1043456
        %v368 = vsel %vm366, %v359, 0
        %370 = vmatprep.subr.bf16.mxu0 0
        %371 = vmatpush1.bf16.msra.mxu0 %v357
        %372 = vmatprep.subr.bf16.mxu0 0
        %373 = vmatpush1.bf16.msra.mxu0 %v358
        %374 = vmatprep.subr.bf16.mxu0 0
        %375 = vmatpush1.bf16.msra.mxu0 %v368
        %376 = vmatprep.subr.bf16.mxu0 0
        %377 = vmatpush1.bf16.msra.mxu0 0
        %378 = vmatprep.subr.bf16.mxu0 0
        %379 = vmatpush1.bf16.msra.mxu0 0
        %380 = vmatprep.subr.bf16.mxu0 0
        %381 = vmatpush1.bf16.msra.mxu0 0
        %382 = vmatprep.subr.bf16.mxu0 0
        %383 = vmatpush1.bf16.msra.mxu0 0
        %384 = vmatprep.subr.bf16.mxu0 0
        %385 = vmatpush1.bf16.msra.mxu0 0
        %386 = vmatprep.subr.bf16.mxu0 0
        %387 = vmatpush1.bf16.msra.mxu0 0
        %388 = vmatprep.subr.bf16.mxu0 0
        %389 = vmatpush1.bf16.msra.mxu0 0
        %390 = vmatprep.subr.bf16.mxu0 0
        %391 = vmatpush1.bf16.msra.mxu0 0
        %392 = vmatprep.subr.bf16.mxu0 0
        %393 = vmatpush1.bf16.msra.mxu0 0
        %394 = vmatprep.subr.bf16.mxu0 0
        %395 = vmatpush1.bf16.msra.mxu0 0
        %396 = vmatprep.subr.bf16.mxu0 0
        %397 = vmatpush1.bf16.msra.mxu0 0
        %398 = vmatprep.subr.bf16.mxu0 0
        %399 = vmatpush1.bf16.msra.mxu0 0
        %400 = vmatprep.subr.bf16.mxu0 0
        %401 = vmatpush1.bf16.msra.mxu0 0
        %402 = vmatprep.mubr.bf16.mxu0 0
        %403 = vmatmul.mubr.bf16.gmra.mrb[0].mxu0 %v364
        %v404 = vpop.f32.mrb[0].mxu0
        %v405 = vadd.f32 %v345, %v404
        %v406 = vpop.f32.mrb[0].mxu0
        %v407 = vpop.f32.mrb[0].mxu0
        %v408 = vpop.f32.mrb[0].mxu0
        %409 = vdwg.mxu0
        %v410 = vld [vmem:[#allocation8] sm:$0xff]
        %v411 = vadd.f32 %v405, %v410
        %v412 = vld [vmem:[#allocation10] sm:$0x1]
        %v413 = vld [vmem:[#allocation11] sm:$0x1]
        %vm414 = vcmask 261120
        %v415 = vsel %vm414, %v411, 0.0
        %416 = vadd.xlane.f32.xlu0 %v415
        %v417 = vpop.xlane.xlu0 %416
        %v418 = vrcp.pop 32.0
        %v419 = vmul.f32 %v417, %v418
        %v420 = vsub.f32 %v411, %v419
        %v421 = vmul.f32 %v420, %v420
        %v422 = vsel %vm414, %v421, 0.0
        %423 = vadd.xlane.f32.xlu0 %v422
        %v424 = vpop.xlane.xlu0 %423
        %v425 = vmul.f32 %v424, %v418
        %v426 = vadd.f32 %v425, 1e-12
        %v427 = vrsqrt.pop %v426
        %v428 = vmul.f32 %v420, %v427
        %v430 = vlaneseq
        %v431 = vshrl.u32 %v430, 7
        %v432 = vsub.s32 0, %v431
        %v433 = vrot.slane %v412, %v432
        %v435 = vmul.f32 %v428, %v433
        %v437 = vlaneseq
        %v438 = vshrl.u32 %v437, 7
        %v439 = vsub.s32 0, %v438
        %v440 = vrot.slane %v413, %v439
        %v442 = vadd.f32 %v435, %v440
        %443 = vst.msk [vmem:[%s331] sm:$0xff] %vm414, %v442
        %s444 = sand.u32 %s165, 1
        %s445 = scalar_lea.sflag [#allocation4], %s444
        %s446 = sand.u32 %s165, 1
        %s447 = smul.addr %s446, 8
        %s448 = scalar_lea.vmem [#allocation13], %s447
        // Predicated region
        $region69: #{tpu_custom_call.1} parent=43 // pred_check
          %p449 = pneg %p175
        $region70: #{tpu_custom_call.1} parent=43 // pred_check_branch
          %451 = sbr.rel (%p449) target = $region72
        $region71: #{tpu_custom_call.1} parent=43 // pred_region
          %s453 = ssub.s32 128, 128
          %454 = vsyncadd %s445, %s453
          %s455 = smul.addr %s26, 128
          %s456 = scalar_lea.hbm %s6, %s455
          %s458 = sshll.u32 %s448, 4
          %s459 = int_to_ptr.vmem [resolvable:$true] %s458
          %461 = dma.vmem_to_hbm [thread:$0]  %s459, 128, %s456, %s445
        $region72: #{tpu_custom_call.1} parent=43 // pred_fallthru
          _
      $region44: #{tpu_custom_call.1} parent=5 // pred_fallthru
        _
      %p462 = scmp.le.s32.totalorder 2, %s21
      // Predicated region
      $region73: #{tpu_custom_call.1} parent=5 // pred_check
        %p463 = pneg %p462
      $region74: #{tpu_custom_call.1} parent=5 // pred_check_branch
        %465 = sbr.rel (%p463) target = $region76
      $region75: #{tpu_custom_call.1} parent=5 // pred_region
        %s466 = ssub.s32 %s21, 2
        // Predicated region
        $region77: #{tpu_custom_call.1} parent=75 // pred_check
          %p467 = pneg %p181
        $region78: #{tpu_custom_call.1} parent=75 // pred_check_branch
          %469 = sbr.rel (%p467) target = $region80
        $region79: #{tpu_custom_call.1} parent=75 // pred_region
          %s470 = sand.u32 %s166, 1
          %s471 = scalar_lea.sflag [#allocation4], %s470
          %s472 = sand.u32 %s166, 1
          %s473 = smul.addr %s472, 8
          %s474 = scalar_lea.vmem [#allocation13], %s473
          %475 = dma.done %s471, 128
        $region80: #{tpu_custom_call.1} parent=75 // pred_fallthru
          _
      $region76: #{tpu_custom_call.1} parent=5 // pred_fallthru
        _
    $region6: #{tpu_custom_call.1} parent=1 // loop_footer
      %s25 = sadd.s32 1, %s21
    $region7: #{tpu_custom_call.1} parent=1 // loop_footer_branch
      %20 = sbr.rel target = $region3
    $region8: #{tpu_custom_call.1} parent=1 // loop_exit
      _
    %476 = vsyncpa [#allocation3], 1
    %s477 = scalar_lea.sflag [#allocation3], 1
    %478 = vsyncpa %s477, 1
    %479 = vsyncpa [#allocation6], 1
    %480 = vsyncpa [#allocation9], 1
    %481 = vsyncpa [#allocation12], 1
    %482 = vsyncpa [#allocation4], 1
    %s483 = scalar_lea.sflag [#allocation4], 1
    %484 = vsyncpa %s483, 1

</llo_original>
